<compile_context>
chip_gen: v6e
topology: v6e:2x2x1
jax: 0.10.0
libtpu: 0.0.40
codegen_flags: <defaults>
</compile_context>

<pallas_src>
import functools

import jax
import jax.numpy as jnp
from jax.experimental import pallas as pl
from jax.experimental.pallas import tpu as pltpu


def _round_up(x, m):
    return ((x + m - 1) // m) * m


def _pad_to(arr, shape):
    pads = [(0, s - d) for d, s in zip(arr.shape, shape)]
    return jnp.pad(arr, pads)


def expert_kernel(x_ref, w1_ref, b1_ref, w2_ref, b2_ref, o_ref,
                  acc_ref, h_ref):
    """One (token-tile, hidden-chunk) step of relu(x@W1+b1)@W2+b2."""
    hk = pl.program_id(1)

    @pl.when(hk == 0)
    def _():
        acc_ref[...] = jnp.zeros_like(acc_ref)

    # First matmul: (tm, Ep) x (Ep, th) -> (tm, th); bf16 in, f32 accumulate.
    h = jnp.dot(x_ref[...], w1_ref[...], preferred_element_type=jnp.float32)
    # Bias + ReLU in f32, stage the chunk in bf16 VMEM scratch for the 2nd dot.
    h_ref[...] = jnp.maximum(h + b1_ref[...], 0.0).astype(h_ref.dtype)

    # Second matmul: (tm, th) x (th, Ep) -> (tm, Ep), accumulated over H-chunks.
    acc_ref[...] += jnp.dot(h_ref[...], w2_ref[...],
                            preferred_element_type=jnp.float32)

    @pl.when(hk == pl.num_programs(1) - 1)
    def _():
        o_ref[...] = (acc_ref[...] + b2_ref[...]).astype(o_ref.dtype)


@functools.partial(jax.jit, static_argnames=("tm", "th"))
def expert_forward(x, w1, b1, w2, b2, *, tm=256, th=512):
    """x: (M, E) f32; w1: (E, 4E); b1: (1, 4E); w2: (4E, E); b2: (1, E).

    Returns (M, E) f32.  Pads tokens / features internally for lane-dense,
    MXU-sized tiles and strips the padding afterwards.
    """
    M, E = x.shape
    H = w1.shape[1]

    Ep = _round_up(E, 128)          # lane-dense embedding
    Hp = _round_up(H, 128)
    th = min(th, Hp)                # hidden chunk (multiple of 128)
    Hp = _round_up(Hp, th)
    Mp = _round_up(M, tm)           # token rows, multiple of the tile

    # bf16 operands for the MXU; biases stay f32 (added to f32 accumulators).
    xp = _pad_to(x, (Mp, Ep)).astype(jnp.bfloat16)
    w1p = _pad_to(w1, (Ep, Hp)).astype(jnp.bfloat16)
    b1p = _pad_to(b1, (1, Hp)).astype(jnp.float32)
    w2p = _pad_to(w2, (Hp, Ep)).astype(jnp.bfloat16)
    b2p = _pad_to(b2, (1, Ep)).astype(jnp.float32)

    grid = (Mp // tm, Hp // th)

    cost = pl.CostEstimate(
        flops=4 * Mp * Ep * Hp,          # two matmuls, 2 flops per MAC
        transcendentals=0,
        bytes_accessed=(xp.size * 2 + w1p.size * 2 + w2p.size * 2
                        + b1p.size * 4 + b2p.size * 4 + Mp * Ep * 4),
    )

    out = pl.pallas_call(
        expert_kernel,
        out_shape=jax.ShapeDtypeStruct((Mp, Ep), jnp.float32),
        grid_spec=pltpu.PrefetchScalarGridSpec(
            num_scalar_prefetch=0,
            grid=grid,
            in_specs=[
                pl.BlockSpec((tm, Ep), lambda i, k: (i, 0)),   # x tile
                pl.BlockSpec((Ep, th), lambda i, k: (0, k)),   # W1 H-chunk
                pl.BlockSpec((1, th), lambda i, k: (0, k)),    # b1 H-chunk
                pl.BlockSpec((th, Ep), lambda i, k: (k, 0)),   # W2 H-chunk
                pl.BlockSpec((1, Ep), lambda i, k: (0, 0)),    # b2 (resident)
            ],
            out_specs=pl.BlockSpec((tm, Ep), lambda i, k: (i, 0)),
            scratch_shapes=[
                pltpu.VMEM((tm, Ep), jnp.float32),    # output accumulator
                pltpu.VMEM((tm, th), jnp.bfloat16),   # staged hidden chunk
            ],
        ),
        compiler_params=pltpu.CompilerParams(
            dimension_semantics=("parallel", "arbitrary"),
            vmem_limit_bytes=64 * 1024 * 1024,
        ),
        cost_estimate=cost,
    )(xp, w1p, b1p, w2p, b2p)

    return out[:M, :E]


def init_expert_params(key, n_embed):
    """Deterministic init mirroring nn.Linear shapes (stored transposed)."""
    h = 4 * n_embed
    k1, k2, k3, k4 = jax.random.split(key, 4)
    # PyTorch Linear default: U(-1/sqrt(fan_in), 1/sqrt(fan_in))
    lim1 = 1.0 / jnp.sqrt(n_embed)
    lim2 = 1.0 / jnp.sqrt(h)
    w1 = jax.random.uniform(k1, (n_embed, h), jnp.float32, -lim1, lim1)
    b1 = jax.random.uniform(k2, (1, h), jnp.float32, -lim1, lim1)
    w2 = jax.random.uniform(k3, (h, n_embed), jnp.float32, -lim2, lim2)
    b2 = jax.random.uniform(k4, (1, n_embed), jnp.float32, -lim2, lim2)
    return w1, b1, w2, b2


if __name__ == "__main__":
    key = jax.random.PRNGKey(0)
    batch, seq, n_embed = 2, 8, 32          # small shapes; hidden = 128
    dropout = 0.1                           # inference mode -> identity

    kx, kp = jax.random.split(key)
    x = jax.random.normal(kx, (batch, seq, n_embed), jnp.float32)
    w1, b1, w2, b2 = init_expert_params(kp, n_embed)

    # flatten (B, T, E) -> (B*T, E) tokens for the kernel, restore afterwards
    x2d = x.reshape(batch * seq, n_embed)
    out2d = expert_forward(x2d, w1, b1, w2, b2)
    out = out2d.reshape(batch, seq, n_embed)
    jax.block_until_ready(out)

    # correctness check against plain-JAX f32 reference (bf16 matmul tolerance)
    ref = jnp.maximum(x2d @ w1 + b1, 0.0) @ w2 + b2
    max_err = float(jnp.max(jnp.abs(out2d - ref)))
    assert jnp.allclose(out2d, ref, atol=5e-2, rtol=5e-2), max_err

    print("KERNEL_OK")
</pallas_src>

<mosaic_0001>
module attributes {stable_mosaic.version = 11 : i64} {
  func.func @expert_kernel(%arg0: i32, %arg1: i32, %arg2: memref<256x128xbf16, #tpu.memory_space<vmem>>, %arg3: memref<128x128xbf16, #tpu.memory_space<vmem>>, %arg4: memref<1x128xf32, #tpu.memory_space<vmem>>, %arg5: memref<128x128xbf16, #tpu.memory_space<vmem>>, %arg6: memref<1x128xf32, #tpu.memory_space<vmem>>, %arg7: memref<256x128xf32, #tpu.memory_space<vmem>>, %arg8: memref<256x128xf32, #tpu.memory_space<vmem>>, %arg9: memref<256x128xbf16, #tpu.memory_space<vmem>>) attributes {dimension_semantics = [#tpu.dimension_semantics<parallel>, #tpu.dimension_semantics<arbitrary>], iteration_bounds = array<i64: 1, 1>, scalar_prefetch = 0 : i64, scratch_operands = 2 : i64, tpu.core_type = #tpu.core_type<tc>, window_params = [{transform_indices = @transform_0, window_bounds = array<i64: 256, 128>}, {transform_indices = @transform_1, window_bounds = array<i64: 128, 128>}, {transform_indices = @transform_2, window_bounds = array<i64: 1, 128>}, {transform_indices = @transform_3, window_bounds = array<i64: 128, 128>}, {pipeline_mode = #tpu.pipeline_mode<synchronous>, transform_indices = @transform_4, window_bounds = array<i64: 1, 128>}, {transform_indices = @transform_5, window_bounds = array<i64: 256, 128>}]} {
    %c0_i32 = arith.constant 0 : i32
    %0 = arith.cmpi eq, %arg1, %c0_i32 : i32
    %1 = arith.extui %0 : i1 to i32
    %c0_i32_0 = arith.constant 0 : i32
    %2 = arith.cmpi ne, %1, %c0_i32_0 : i32
    scf.if %2 {
      %cst_20 = arith.constant 0.000000e+00 : f32
      %22 = vector.broadcast %cst_20 : f32 to vector<256x128xf32>
      %c0_21 = arith.constant 0 : index
      %c0_22 = arith.constant 0 : index
      %23 = vector.load %arg8[%c0_21, %c0_22] : memref<256x128xf32, #tpu.memory_space<vmem>>, vector<256x128xf32>
      tpu.vector_store %arg8[%c0_21, %c0_22], %22 {strides = array<i32>} : memref<256x128xf32, #tpu.memory_space<vmem>>, vector<256x128xf32>,
    } else {
    }
    %c0 = arith.constant 0 : index
    %c0_1 = arith.constant 0 : index
    %3 = vector.load %arg2[%c0, %c0_1] : memref<256x128xbf16, #tpu.memory_space<vmem>>, vector<256x128xbf16>
    %c0_2 = arith.constant 0 : index
    %c0_3 = arith.constant 0 : index
    %4 = vector.load %arg3[%c0_2, %c0_3] : memref<128x128xbf16, #tpu.memory_space<vmem>>, vector<128x128xbf16>
    %cst = arith.constant dense<0.000000e+00> : vector<256x128xf32>
    %5 = tpu.matmul %3, %4, %cst {dimension_numbers = #tpu.dot_dimension_numbers<[1], [0], [0], [1], [0, 0, 1, 1], [], []>} : vector<256x128xbf16>, vector<128x128xbf16>, vector<256x128xf32> -> vector<256x128xf32>
    %c0_4 = arith.constant 0 : index
    %c0_5 = arith.constant 0 : index
    %6 = vector.load %arg4[%c0_4, %c0_5] : memref<1x128xf32, #tpu.memory_space<vmem>>, vector<1x128xf32>
    %7 = vector.broadcast %6 : vector<1x128xf32> to vector<256x128xf32>
    %8 = arith.addf %5, %7 : vector<256x128xf32>
    %cst_6 = arith.constant 0.000000e+00 : f32
    %9 = vector.broadcast %cst_6 : f32 to vector<256x128xf32>
    %10 = arith.maximumf %8, %9 : vector<256x128xf32>
    %11 = arith.truncf %10 : vector<256x128xf32> to vector<256x128xbf16>
    %c0_7 = arith.constant 0 : index
    %c0_8 = arith.constant 0 : index
    %12 = vector.load %arg9[%c0_7, %c0_8] : memref<256x128xbf16, #tpu.memory_space<vmem>>, vector<256x128xbf16>
    tpu.vector_store %arg9[%c0_7, %c0_8], %11 {strides = array<i32>} : memref<256x128xbf16, #tpu.memory_space<vmem>>, vector<256x128xbf16>,
    %c0_9 = arith.constant 0 : index
    %c0_10 = arith.constant 0 : index
    %13 = vector.load %arg8[%c0_9, %c0_10] : memref<256x128xf32, #tpu.memory_space<vmem>>, vector<256x128xf32>
    %c0_11 = arith.constant 0 : index
    %c0_12 = arith.constant 0 : index
    %14 = vector.load %arg9[%c0_11, %c0_12] : memref<256x128xbf16, #tpu.memory_space<vmem>>, vector<256x128xbf16>
    %c0_13 = arith.constant 0 : index
    %c0_14 = arith.constant 0 : index
    %15 = vector.load %arg5[%c0_13, %c0_14] : memref<128x128xbf16, #tpu.memory_space<vmem>>, vector<128x128xbf16>
    %cst_15 = arith.constant dense<0.000000e+00> : vector<256x128xf32>
    %16 = tpu.matmul %14, %15, %cst_15 {dimension_numbers = #tpu.dot_dimension_numbers<[1], [0], [0], [1], [0, 0, 1, 1], [], []>} : vector<256x128xbf16>, vector<128x128xbf16>, vector<256x128xf32> -> vector<256x128xf32>
    %17 = arith.addf %13, %16 : vector<256x128xf32>
    %c0_16 = arith.constant 0 : index
    %c0_17 = arith.constant 0 : index
    %18 = vector.load %arg8[%c0_16, %c0_17] : memref<256x128xf32, #tpu.memory_space<vmem>>, vector<256x128xf32>
    tpu.vector_store %arg8[%c0_16, %c0_17], %17 {strides = array<i32>} : memref<256x128xf32, #tpu.memory_space<vmem>>, vector<256x128xf32>,
    %c0_i32_18 = arith.constant 0 : i32
    %19 = arith.cmpi eq, %arg1, %c0_i32_18 : i32
    %20 = arith.extui %19 : i1 to i32
    %c0_i32_19 = arith.constant 0 : i32
    %21 = arith.cmpi ne, %20, %c0_i32_19 : i32
    scf.if %21 {
      %c0_20 = arith.constant 0 : index
      %c0_21 = arith.constant 0 : index
      %22 = vector.load %arg8[%c0_20, %c0_21] : memref<256x128xf32, #tpu.memory_space<vmem>>, vector<256x128xf32>
      %c0_22 = arith.constant 0 : index
      %c0_23 = arith.constant 0 : index
      %23 = vector.load %arg6[%c0_22, %c0_23] : memref<1x128xf32, #tpu.memory_space<vmem>>, vector<1x128xf32>
      %24 = vector.broadcast %23 : vector<1x128xf32> to vector<256x128xf32>
      %25 = arith.addf %22, %24 : vector<256x128xf32>
      %c0_24 = arith.constant 0 : index
      %c0_25 = arith.constant 0 : index
      %26 = vector.load %arg7[%c0_24, %c0_25] : memref<256x128xf32, #tpu.memory_space<vmem>>, vector<256x128xf32>
      tpu.vector_store %arg7[%c0_24, %c0_25], %25 {strides = array<i32>} : memref<256x128xf32, #tpu.memory_space<vmem>>, vector<256x128xf32>,
    } else {
    }
    return
  }
  func.func @transform_0(%arg0: i32, %arg1: i32) -> (i32, i32) {
    %c0_i32 = arith.constant 0 : i32
    %c0_i32_0 = arith.constant 0 : i32
    return %arg0, %c0_i32 : i32, i32
  }
  func.func @transform_1(%arg0: i32, %arg1: i32) -> (i32, i32) {
    %c0_i32 = arith.constant 0 : i32
    %c0_i32_0 = arith.constant 0 : i32
    return %c0_i32, %arg1 : i32, i32
  }
  func.func @transform_2(%arg0: i32, %arg1: i32) -> (i32, i32) {
    %c0_i32 = arith.constant 0 : i32
    %c0_i32_0 = arith.constant 0 : i32
    return %c0_i32, %arg1 : i32, i32
  }
  func.func @transform_3(%arg0: i32, %arg1: i32) -> (i32, i32) {
    %c0_i32 = arith.constant 0 : i32
    %c0_i32_0 = arith.constant 0 : i32
    return %arg1, %c0_i32 : i32, i32
  }
  func.func @transform_4(%arg0: i32, %arg1: i32) -> (i32, i32) {
    %c0_i32 = arith.constant 0 : i32
    %c0_i32_0 = arith.constant 0 : i32
    %c0_i32_1 = arith.constant 0 : i32
    return %c0_i32, %c0_i32_0 : i32, i32
  }
  func.func @transform_5(%arg0: i32, %arg1: i32) -> (i32, i32) {
    %c0_i32 = arith.constant 0 : i32
    %c0_i32_0 = arith.constant 0 : i32
    return %arg0, %c0_i32 : i32, i32
  }
}

</mosaic_0001>

<llo_original>
// kernel: expert_forward.1
$region0: #{expert_forward.1}
  #allocation0 [shape = 'u32[]', space=smem, size = 0x4, offset = 0x4, fixed_abs, tag = 'smem constant byte address 0x4 - core index']
  #allocation1 [shape = 'u32[144,128]{1,0:T(1,128)}', space=vmem, size = 0x12000, scoped, tag = 'internal scratch']
  #allocation2 [shape = 'f32[256,128]{1,0:T(8,128)}', space=vmem, size = 0x20000, scoped, tag = 'scratch operand']
  #allocation3 [shape = 'bf16[256,128]{1,0:T(8,128)(2,1)}', space=vmem, size = 0x10000, scoped, tag = 'scratch operand']
  %s0 = inlined_call_operand.vmem [shape: bf16[256,128], index: 0, kind: input, shape index: {}]
  %s1 = inlined_call_operand.vmem [shape: bf16[128,128], index: 1, kind: input, shape index: {}]
  %s2 = inlined_call_operand.vmem [shape: f32[1,128], index: 2, kind: input, shape index: {}]
  %s3 = inlined_call_operand.vmem [shape: bf16[128,128], index: 3, kind: input, shape index: {}]
  %s4 = inlined_call_operand.vmem [shape: f32[1,128], index: 4, kind: input, shape index: {}]
  %s5 = inlined_call_operand.vmem [shape: f32[256,128], index: 5, kind: output, shape index: {}]
  %s6 = sld [smem:[#allocation0]]
  $region38: #{expert_forward.1} parent=0
    _
  %s8 = ssub.s32 1, %s6
  %s9 = scalar_select 0, %s8, %s6
  // Predicated region
  $region2: #{expert_forward.1} parent=0 // pred_check
    _
  $region3: #{expert_forward.1} parent=0 // pred_check_branch
    %11 = sbr.rel (0) target = $region5
  $region4: #{expert_forward.1} parent=0 // pred_region
    _
  $region5: #{expert_forward.1} parent=0 // pred_fallthru
    _
  // Predicated region
  $region6: #{expert_forward.1} parent=0 // pred_check
    _
  $region7: #{expert_forward.1} parent=0 // pred_check_branch
    %13 = sbr.rel (0) target = $region9
  $region8: #{expert_forward.1} parent=0 // pred_region
    _
  $region9: #{expert_forward.1} parent=0 // pred_fallthru
    _
  // Predicated region
  $region10: #{expert_forward.1} parent=0 // pred_check
    _
  $region11: #{expert_forward.1} parent=0 // pred_check_branch
    %15 = sbr.rel (0) target = $region13
  $region12: #{expert_forward.1} parent=0 // pred_region
    _
  $region13: #{expert_forward.1} parent=0 // pred_fallthru
    _
  // Predicated region
  $region14: #{expert_forward.1} parent=0 // pred_check
    _
  $region15: #{expert_forward.1} parent=0 // pred_check_branch
    %17 = sbr.rel (0) target = $region17
  $region16: #{expert_forward.1} parent=0 // pred_region
    _
  $region17: #{expert_forward.1} parent=0 // pred_fallthru
    _
  // Predicated region
  $region18: #{expert_forward.1} parent=0 // pred_check
    _
  $region19: #{expert_forward.1} parent=0 // pred_check_branch
    %19 = sbr.rel (0) target = $region21
  $region20: #{expert_forward.1} parent=0 // pred_region
    _
  $region21: #{expert_forward.1} parent=0 // pred_fallthru
    _
  %p21 = scmp.eq.s32.totalorder 0, 0
  // Predicated region
  $region22: #{expert_forward.1} parent=0 // pred_check
    %p22 = pneg %p21
  $region23: #{expert_forward.1} parent=0 // pred_check_branch
    %24 = sbr.rel (%p22) target = $region25
  $region24: #{expert_forward.1} parent=0 // pred_region
    %25 = vst [vmem:[#allocation2] sm:$0xff] 0.0
    %26 = vst [vmem:[#allocation2 + $0x8] sm:$0xff] 0.0
    %27 = vst [vmem:[#allocation2 + $0x10] sm:$0xff] 0.0
    %28 = vst [vmem:[#allocation2 + $0x18] sm:$0xff] 0.0
    %29 = vst [vmem:[#allocation2 + $0x20] sm:$0xff] 0.0
    %30 = vst [vmem:[#allocation2 + $0x28] sm:$0xff] 0.0
    %31 = vst [vmem:[#allocation2 + $0x30] sm:$0xff] 0.0
    %32 = vst [vmem:[#allocation2 + $0x38] sm:$0xff] 0.0
    %33 = vst [vmem:[#allocation2 + $0x40] sm:$0xff] 0.0
    %34 = vst [vmem:[#allocation2 + $0x48] sm:$0xff] 0.0
    %35 = vst [vmem:[#allocation2 + $0x50] sm:$0xff] 0.0
    %36 = vst [vmem:[#allocation2 + $0x58] sm:$0xff] 0.0
    %37 = vst [vmem:[#allocation2 + $0x60] sm:$0xff] 0.0
    %38 = vst [vmem:[#allocation2 + $0x68] sm:$0xff] 0.0
    %39 = vst [vmem:[#allocation2 + $0x70] sm:$0xff] 0.0
    %40 = vst [vmem:[#allocation2 + $0x78] sm:$0xff] 0.0
    %41 = vst [vmem:[#allocation2 + $0x80] sm:$0xff] 0.0
    %42 = vst [vmem:[#allocation2 + $0x88] sm:$0xff] 0.0
    %43 = vst [vmem:[#allocation2 + $0x90] sm:$0xff] 0.0
    %44 = vst [vmem:[#allocation2 + $0x98] sm:$0xff] 0.0
    %45 = vst [vmem:[#allocation2 + $0xa0] sm:$0xff] 0.0
    %46 = vst [vmem:[#allocation2 + $0xa8] sm:$0xff] 0.0
    %47 = vst [vmem:[#allocation2 + $0xb0] sm:$0xff] 0.0
    %48 = vst [vmem:[#allocation2 + $0xb8] sm:$0xff] 0.0
    %49 = vst [vmem:[#allocation2 + $0xc0] sm:$0xff] 0.0
    %50 = vst [vmem:[#allocation2 + $0xc8] sm:$0xff] 0.0
    %51 = vst [vmem:[#allocation2 + $0xd0] sm:$0xff] 0.0
    %52 = vst [vmem:[#allocation2 + $0xd8] sm:$0xff] 0.0
    %53 = vst [vmem:[#allocation2 + $0xe0] sm:$0xff] 0.0
    %54 = vst [vmem:[#allocation2 + $0xe8] sm:$0xff] 0.0
    %55 = vst [vmem:[#allocation2 + $0xf0] sm:$0xff] 0.0
    %56 = vst [vmem:[#allocation2 + $0xf8] sm:$0xff] 0.0
  $region25: #{expert_forward.1} parent=0 // pred_fallthru
    _
  %v57 = vld [vmem:[%s0] sm:$0xf]
  %v58 = vld [vmem:[%s0 + $0x4] sm:$0xf]
  %v59 = vld [vmem:[%s0 + $0x8] sm:$0xf]
  %v60 = vld [vmem:[%s0 + $0xc] sm:$0xf]
  %v61 = vld [vmem:[%s0 + $0x10] sm:$0xf]
  %v62 = vld [vmem:[%s0 + $0x14] sm:$0xf]
  %v63 = vld [vmem:[%s0 + $0x18] sm:$0xf]
  %v64 = vld [vmem:[%s0 + $0x1c] sm:$0xf]
  %v65 = vld [vmem:[%s0 + $0x20] sm:$0xf]
  %v66 = vld [vmem:[%s0 + $0x24] sm:$0xf]
  %v67 = vld [vmem:[%s0 + $0x28] sm:$0xf]
  %v68 = vld [vmem:[%s0 + $0x2c] sm:$0xf]
  %v69 = vld [vmem:[%s0 + $0x30] sm:$0xf]
  %v70 = vld [vmem:[%s0 + $0x34] sm:$0xf]
  %v71 = vld [vmem:[%s0 + $0x38] sm:$0xf]
  %v72 = vld [vmem:[%s0 + $0x3c] sm:$0xf]
  %v73 = vld [vmem:[%s0 + $0x40] sm:$0xf]
  %v74 = vld [vmem:[%s0 + $0x44] sm:$0xf]
  %v75 = vld [vmem:[%s0 + $0x48] sm:$0xf]
  %v76 = vld [vmem:[%s0 + $0x4c] sm:$0xf]
  %v77 = vld [vmem:[%s0 + $0x50] sm:$0xf]
  %v78 = vld [vmem:[%s0 + $0x54] sm:$0xf]
  %v79 = vld [vmem:[%s0 + $0x58] sm:$0xf]
  %v80 = vld [vmem:[%s0 + $0x5c] sm:$0xf]
  %v81 = vld [vmem:[%s0 + $0x60] sm:$0xf]
  %v82 = vld [vmem:[%s0 + $0x64] sm:$0xf]
  %v83 = vld [vmem:[%s0 + $0x68] sm:$0xf]
  %v84 = vld [vmem:[%s0 + $0x6c] sm:$0xf]
  %v85 = vld [vmem:[%s0 + $0x70] sm:$0xf]
  %v86 = vld [vmem:[%s0 + $0x74] sm:$0xf]
  %v87 = vld [vmem:[%s0 + $0x78] sm:$0xf]
  %v88 = vld [vmem:[%s0 + $0x7c] sm:$0xf]
  %v89 = vld [vmem:[%s1] sm:$0xf]
  %v90 = vld [vmem:[%s1 + $0x4] sm:$0xf]
  %v91 = vld [vmem:[%s1 + $0x8] sm:$0xf]
  %v92 = vld [vmem:[%s1 + $0xc] sm:$0xf]
  %v93 = vld [vmem:[%s1 + $0x10] sm:$0xf]
  %v94 = vld [vmem:[%s1 + $0x14] sm:$0xf]
  %v95 = vld [vmem:[%s1 + $0x18] sm:$0xf]
  %v96 = vld [vmem:[%s1 + $0x1c] sm:$0xf]
  %v97 = vld [vmem:[%s1 + $0x20] sm:$0xf]
  %v98 = vld [vmem:[%s1 + $0x24] sm:$0xf]
  %v99 = vld [vmem:[%s1 + $0x28] sm:$0xf]
  %v100 = vld [vmem:[%s1 + $0x2c] sm:$0xf]
  %v101 = vld [vmem:[%s1 + $0x30] sm:$0xf]
  %v102 = vld [vmem:[%s1 + $0x34] sm:$0xf]
  %v103 = vld [vmem:[%s1 + $0x38] sm:$0xf]
  %v104 = vld [vmem:[%s1 + $0x3c] sm:$0xf]
  %v105 = vld [vmem:[%s2] sm:$0x1]
  %v107 = vlaneseq
  %v108 = vshrl.u32 %v107, 7
  %v109 = vsub.s32 0, %v108
  %v110 = vrot.slane %v105, %v109
  %v144 = vunpack.c.l.b16 %v57
  %v145 = vunpack.c.l.b16 %v58
  %v146 = vunpack.c.l.b16 %v59
  %v147 = vunpack.c.l.b16 %v60
  %v148 = vunpack.c.l.b16 %v61
  %v149 = vunpack.c.l.b16 %v62
  %v150 = vunpack.c.l.b16 %v63
  %v151 = vunpack.c.l.b16 %v64
  %v152 = vunpack.c.l.b16 %v65
  %v153 = vunpack.c.l.b16 %v66
  %v154 = vunpack.c.l.b16 %v67
  %v155 = vunpack.c.l.b16 %v68
  %v156 = vunpack.c.l.b16 %v69
  %v157 = vunpack.c.l.b16 %v70
  %v158 = vunpack.c.l.b16 %v71
  %v159 = vunpack.c.l.b16 %v72
  %v160 = vunpack.c.l.b16 %v73
  %v161 = vunpack.c.l.b16 %v74
  %v162 = vunpack.c.l.b16 %v75
  %v163 = vunpack.c.l.b16 %v76
  %v164 = vunpack.c.l.b16 %v77
  %v165 = vunpack.c.l.b16 %v78
  %v166 = vunpack.c.l.b16 %v79
  %v167 = vunpack.c.l.b16 %v80
  %v168 = vunpack.c.l.b16 %v81
  %v169 = vunpack.c.l.b16 %v82
  %v170 = vunpack.c.l.b16 %v83
  %v171 = vunpack.c.l.b16 %v84
  %v172 = vunpack.c.l.b16 %v85
  %v173 = vunpack.c.l.b16 %v86
  %v174 = vunpack.c.l.b16 %v87
  %v175 = vunpack.c.l.b16 %v88
  %v176 = vpack.c.b16 %v145, %v144
  %v177 = vpack.c.b16 %v147, %v146
  %v178 = vpack.c.b16 %v149, %v148
  %v179 = vpack.c.b16 %v151, %v150
  %v180 = vpack.c.b16 %v153, %v152
  %v181 = vpack.c.b16 %v155, %v154
  %v182 = vpack.c.b16 %v157, %v156
  %v183 = vpack.c.b16 %v159, %v158
  %v184 = vpack.c.b16 %v161, %v160
  %v185 = vpack.c.b16 %v163, %v162
  %v186 = vpack.c.b16 %v165, %v164
  %v187 = vpack.c.b16 %v167, %v166
  %v188 = vpack.c.b16 %v169, %v168
  %v189 = vpack.c.b16 %v171, %v170
  %v190 = vpack.c.b16 %v173, %v172
  %v191 = vpack.c.b16 %v175, %v174
  %v224 = vunpack.c.l.b16 %v89
  %v225 = vunpack.c.l.b16 %v90
  %v226 = vunpack.c.l.b16 %v91
  %v227 = vunpack.c.l.b16 %v92
  %v228 = vunpack.c.l.b16 %v93
  %v229 = vunpack.c.l.b16 %v94
  %v230 = vunpack.c.l.b16 %v95
  %v231 = vunpack.c.l.b16 %v96
  %v232 = vunpack.c.l.b16 %v97
  %v233 = vunpack.c.l.b16 %v98
  %v234 = vunpack.c.l.b16 %v99
  %v235 = vunpack.c.l.b16 %v100
  %v236 = vunpack.c.l.b16 %v101
  %v237 = vunpack.c.l.b16 %v102
  %v238 = vunpack.c.l.b16 %v103
  %v239 = vunpack.c.l.b16 %v104
  %v240 = vpack.c.b16 %v225, %v224
  %v241 = vpack.c.b16 %v227, %v226
  %v242 = vpack.c.b16 %v229, %v228
  %v243 = vpack.c.b16 %v231, %v230
  %v244 = vpack.c.b16 %v233, %v232
  %v245 = vpack.c.b16 %v235, %v234
  %v246 = vpack.c.b16 %v237, %v236
  %v247 = vpack.c.b16 %v239, %v238
  %256 = vmatprep.subr.bf16.mxu0 0
  %257 = vmatpush1.bf16.msra.mxu0 %v247
  %258 = vmatprep.subr.bf16.mxu0 0
  %259 = vmatpush1.bf16.msra.mxu0 %v246
  %260 = vmatprep.subr.bf16.mxu0 0
  %261 = vmatpush1.bf16.msra.mxu0 %v245
  %262 = vmatprep.subr.bf16.mxu0 0
  %263 = vmatpush1.bf16.msra.mxu0 %v244
  %264 = vmatprep.subr.bf16.mxu0 0
  %265 = vmatpush1.bf16.msra.mxu0 %v243
  %266 = vmatprep.subr.bf16.mxu0 0
  %267 = vmatpush1.bf16.msra.mxu0 %v242
  %268 = vmatprep.subr.bf16.mxu0 0
  %269 = vmatpush1.bf16.msra.mxu0 %v241
  %270 = vmatprep.subr.bf16.mxu0 0
  %271 = vmatpush1.bf16.msra.mxu0 %v240
  %272 = vmatprep.subr.bf16.mxu0 0
  %273 = vmatpush2.bf16.msra.mxu0 0
  %274 = vmatprep.subr.bf16.mxu0 0
  %275 = vmatpush2.bf16.msra.mxu0 0
  %276 = vmatprep.subr.bf16.mxu0 0
  %277 = vmatpush2.bf16.msra.mxu0 0
  %278 = vmatprep.subr.bf16.mxu0 0
  %279 = vmatpush2.bf16.msra.mxu0 0
  %280 = vmatprep.subr.bf16.mxu0 0
  %281 = vmatpush2.bf16.msra.mxu0 0
  %282 = vmatprep.subr.bf16.mxu0 0
  %283 = vmatpush2.bf16.msra.mxu0 0
  %284 = vmatprep.subr.bf16.mxu0 0
  %285 = vmatpush2.bf16.msra.mxu0 0
  %286 = vmatprep.subr.bf16.mxu0 0
  %287 = vmatpush2.bf16.msra.mxu0 0
  %288 = vmatprep.mubr.bf16.mxu0 0
  %289 = vmatmul.mubr.bf16.gmra.mxu0 %v176
  %v290 = vpop.f32.mrf.mxu0
  %v291 = vadd.f32 %v110, %v290
  %v292 = vpop.f32.mrf.mxu0
  %v293 = vpop.f32.mrf.mxu0
  %v294 = vadd.f32 %v110, %v293
  %v295 = vpop.f32.mrf.mxu0
  %296 = vmatprep.mubr.bf16.mxu0 0
  %297 = vmatmul.mubr.bf16.gmra.mxu0 %v177
  %v298 = vpop.f32.mrf.mxu0
  %v299 = vadd.f32 %v110, %v298
  %v300 = vpop.f32.mrf.mxu0
  %v301 = vpop.f32.mrf.mxu0
  %v302 = vadd.f32 %v110, %v301
  %v303 = vpop.f32.mrf.mxu0
  %304 = vmatprep.mubr.bf16.mxu0 0
  %305 = vmatmul.mubr.bf16.gmra.mxu0 %v178
  %v306 = vpop.f32.mrf.mxu0
  %v307 = vadd.f32 %v110, %v306
  %v308 = vpop.f32.mrf.mxu0
  %v309 = vpop.f32.mrf.mxu0
  %v310 = vadd.f32 %v110, %v309
  %v311 = vpop.f32.mrf.mxu0
  %312 = vmatprep.mubr.bf16.mxu0 0
  %313 = vmatmul.mubr.bf16.gmra.mxu0 %v179
  %v314 = vpop.f32.mrf.mxu0
  %v315 = vadd.f32 %v110, %v314
  %v316 = vpop.f32.mrf.mxu0
  %v317 = vpop.f32.mrf.mxu0
  %v318 = vadd.f32 %v110, %v317
  %v319 = vpop.f32.mrf.mxu0
  %320 = vmatprep.mubr.bf16.mxu0 0
  %321 = vmatmul.mubr.bf16.gmra.mxu0 %v180
  %v322 = vpop.f32.mrf.mxu0
  %v323 = vadd.f32 %v110, %v322
  %v324 = vpop.f32.mrf.mxu0
  %v325 = vpop.f32.mrf.mxu0
  %v326 = vadd.f32 %v110, %v325
  %v327 = vpop.f32.mrf.mxu0
  %328 = vmatprep.mubr.bf16.mxu0 0
  %329 = vmatmul.mubr.bf16.gmra.mxu0 %v181
  %v330 = vpop.f32.mrf.mxu0
  %v331 = vadd.f32 %v110, %v330
  %v332 = vpop.f32.mrf.mxu0
  %v333 = vpop.f32.mrf.mxu0
  %v334 = vadd.f32 %v110, %v333
  %v335 = vpop.f32.mrf.mxu0
  %336 = vmatprep.mubr.bf16.mxu0 0
  %337 = vmatmul.mubr.bf16.gmra.mxu0 %v182
  %v338 = vpop.f32.mrf.mxu0
  %v339 = vadd.f32 %v110, %v338
  %v340 = vpop.f32.mrf.mxu0
  %v341 = vpop.f32.mrf.mxu0
  %v342 = vadd.f32 %v110, %v341
  %v343 = vpop.f32.mrf.mxu0
  %344 = vmatprep.mubr.bf16.mxu0 0
  %345 = vmatmul.mubr.bf16.gmra.mxu0 %v183
  %v346 = vpop.f32.mrf.mxu0
  %v347 = vadd.f32 %v110, %v346
  %v348 = vpop.f32.mrf.mxu0
  %v349 = vpop.f32.mrf.mxu0
  %v350 = vadd.f32 %v110, %v349
  %v351 = vpop.f32.mrf.mxu0
  %352 = vmatprep.mubr.bf16.mxu0 0
  %353 = vmatmul.mubr.bf16.gmra.mxu0 %v184
  %v354 = vpop.f32.mrf.mxu0
  %v355 = vadd.f32 %v110, %v354
  %v356 = vpop.f32.mrf.mxu0
  %v357 = vpop.f32.mrf.mxu0
  %v358 = vadd.f32 %v110, %v357
  %v359 = vpop.f32.mrf.mxu0
  %360 = vmatprep.mubr.bf16.mxu0 0
  %361 = vmatmul.mubr.bf16.gmra.mxu0 %v185
  %v362 = vpop.f32.mrf.mxu0
  %v363 = vadd.f32 %v110, %v362
  %v364 = vpop.f32.mrf.mxu0
  %v365 = vpop.f32.mrf.mxu0
  %v366 = vadd.f32 %v110, %v365
  %v367 = vpop.f32.mrf.mxu0
  %368 = vmatprep.mubr.bf16.mxu0 0
  %369 = vmatmul.mubr.bf16.gmra.mxu0 %v186
  %v370 = vpop.f32.mrf.mxu0
  %v371 = vadd.f32 %v110, %v370
  %v372 = vpop.f32.mrf.mxu0
  %v373 = vpop.f32.mrf.mxu0
  %v374 = vadd.f32 %v110, %v373
  %v375 = vpop.f32.mrf.mxu0
  %376 = vmatprep.mubr.bf16.mxu0 0
  %377 = vmatmul.mubr.bf16.gmra.mxu0 %v187
  %v378 = vpop.f32.mrf.mxu0
  %v379 = vadd.f32 %v110, %v378
  %v380 = vpop.f32.mrf.mxu0
  %v381 = vpop.f32.mrf.mxu0
  %v382 = vadd.f32 %v110, %v381
  %v383 = vpop.f32.mrf.mxu0
  %384 = vmatprep.mubr.bf16.mxu0 0
  %385 = vmatmul.mubr.bf16.gmra.mxu0 %v188
  %v386 = vpop.f32.mrf.mxu0
  %v387 = vadd.f32 %v110, %v386
  %v388 = vpop.f32.mrf.mxu0
  %v389 = vpop.f32.mrf.mxu0
  %v390 = vadd.f32 %v110, %v389
  %v391 = vpop.f32.mrf.mxu0
  %392 = vmatprep.mubr.bf16.mxu0 0
  %393 = vmatmul.mubr.bf16.gmra.mxu0 %v189
  %v394 = vpop.f32.mrf.mxu0
  %v395 = vadd.f32 %v110, %v394
  %v396 = vpop.f32.mrf.mxu0
  %v397 = vpop.f32.mrf.mxu0
  %v398 = vadd.f32 %v110, %v397
  %v399 = vpop.f32.mrf.mxu0
  %400 = vmatprep.mubr.bf16.mxu0 0
  %401 = vmatmul.mubr.bf16.gmra.mxu0 %v190
  %v402 = vpop.f32.mrf.mxu0
  %v403 = vadd.f32 %v110, %v402
  %v404 = vpop.f32.mrf.mxu0
  %v405 = vpop.f32.mrf.mxu0
  %v406 = vadd.f32 %v110, %v405
  %v407 = vpop.f32.mrf.mxu0
  %408 = vmatprep.mubr.bf16.mxu0 0
  %409 = vmatmul.mubr.bf16.gmra.mxu0 %v191
  %v410 = vpop.f32.mrf.mxu0
  %v411 = vadd.f32 %v110, %v410
  %v412 = vpop.f32.mrf.mxu0
  %v413 = vpop.f32.mrf.mxu0
  %v414 = vadd.f32 %v110, %v413
  %v415 = vpop.f32.mrf.mxu0
  %416 = vdwg.mxu0
  %v417 = vmax.f32 %v291, 0.0
  %v418 = vmax.f32 %v294, 0.0
  %v419 = vmax.f32 %v299, 0.0
  %v420 = vmax.f32 %v302, 0.0
  %v421 = vmax.f32 %v307, 0.0
  %v422 = vmax.f32 %v310, 0.0
  %v423 = vmax.f32 %v315, 0.0
  %v424 = vmax.f32 %v318, 0.0
  %v425 = vmax.f32 %v323, 0.0
  %v426 = vmax.f32 %v326, 0.0
  %v427 = vmax.f32 %v331, 0.0
  %v428 = vmax.f32 %v334, 0.0
  %v429 = vmax.f32 %v339, 0.0
  %v430 = vmax.f32 %v342, 0.0
  %v431 = vmax.f32 %v347, 0.0
  %v432 = vmax.f32 %v350, 0.0
  %v433 = vmax.f32 %v355, 0.0
  %v434 = vmax.f32 %v358, 0.0
  %v435 = vmax.f32 %v363, 0.0
  %v436 = vmax.f32 %v366, 0.0
  %v437 = vmax.f32 %v371, 0.0
  %v438 = vmax.f32 %v374, 0.0
  %v439 = vmax.f32 %v379, 0.0
  %v440 = vmax.f32 %v382, 0.0
  %v441 = vmax.f32 %v387, 0.0
  %v442 = vmax.f32 %v390, 0.0
  %v443 = vmax.f32 %v395, 0.0
  %v444 = vmax.f32 %v398, 0.0
  %v445 = vmax.f32 %v403, 0.0
  %v446 = vmax.f32 %v406, 0.0
  %v447 = vmax.f32 %v411, 0.0
  %v448 = vmax.f32 %v414, 0.0
  %v449 = vpack.c.bf16 %v418, %v417
  %v450 = vpack.c.bf16 %v420, %v419
  %v451 = vpack.c.bf16 %v422, %v421
  %v452 = vpack.c.bf16 %v424, %v423
  %v453 = vpack.c.bf16 %v426, %v425
  %v454 = vpack.c.bf16 %v428, %v427
  %v455 = vpack.c.bf16 %v430, %v429
  %v456 = vpack.c.bf16 %v432, %v431
  %v457 = vpack.c.bf16 %v434, %v433
  %v458 = vpack.c.bf16 %v436, %v435
  %v459 = vpack.c.bf16 %v438, %v437
  %v460 = vpack.c.bf16 %v440, %v439
  %v461 = vpack.c.bf16 %v442, %v441
  %v462 = vpack.c.bf16 %v444, %v443
  %v463 = vpack.c.bf16 %v446, %v445
  %v464 = vpack.c.bf16 %v448, %v447
  %v481 = vunpack.c.l.b16 %v449
  %v482 = vunpack.c.h.b16 %v449
  %v483 = vunpack.c.l.b16 %v450
  %v484 = vunpack.c.h.b16 %v450
  %v485 = vunpack.c.l.b16 %v451
  %v486 = vunpack.c.h.b16 %v451
  %v487 = vunpack.c.l.b16 %v452
  %v488 = vunpack.c.h.b16 %v452
  %v489 = vunpack.c.l.b16 %v453
  %v490 = vunpack.c.h.b16 %v453
  %v491 = vunpack.c.l.b16 %v454
  %v492 = vunpack.c.h.b16 %v454
  %v493 = vunpack.c.l.b16 %v455
  %v494 = vunpack.c.h.b16 %v455
  %v495 = vunpack.c.l.b16 %v456
  %v496 = vunpack.c.h.b16 %v456
  %v497 = vunpack.c.l.b16 %v457
  %v498 = vunpack.c.h.b16 %v457
  %v499 = vunpack.c.l.b16 %v458
  %v500 = vunpack.c.h.b16 %v458
  %v501 = vunpack.c.l.b16 %v459
  %v502 = vunpack.c.h.b16 %v459
  %v503 = vunpack.c.l.b16 %v460
  %v504 = vunpack.c.h.b16 %v460
  %v505 = vunpack.c.l.b16 %v461
  %v506 = vunpack.c.h.b16 %v461
  %v507 = vunpack.c.l.b16 %v462
  %v508 = vunpack.c.h.b16 %v462
  %v509 = vunpack.c.l.b16 %v463
  %v510 = vunpack.c.h.b16 %v463
  %v511 = vunpack.c.l.b16 %v464
  %v512 = vunpack.c.h.b16 %v464
  %v513 = vpack.c.b16 %v481, %v481
  %v514 = vpack.c.b16 %v482, %v482
  %v515 = vpack.c.b16 %v483, %v483
  %v516 = vpack.c.b16 %v484, %v484
  %v517 = vpack.c.b16 %v485, %v485
  %v518 = vpack.c.b16 %v486, %v486
  %v519 = vpack.c.b16 %v487, %v487
  %v520 = vpack.c.b16 %v488, %v488
  %v521 = vpack.c.b16 %v489, %v489
  %v522 = vpack.c.b16 %v490, %v490
  %v523 = vpack.c.b16 %v491, %v491
  %v524 = vpack.c.b16 %v492, %v492
  %v525 = vpack.c.b16 %v493, %v493
  %v526 = vpack.c.b16 %v494, %v494
  %v527 = vpack.c.b16 %v495, %v495
  %v528 = vpack.c.b16 %v496, %v496
  %v529 = vpack.c.b16 %v497, %v497
  %v530 = vpack.c.b16 %v498, %v498
  %v531 = vpack.c.b16 %v499, %v499
  %v532 = vpack.c.b16 %v500, %v500
  %v533 = vpack.c.b16 %v501, %v501
  %v534 = vpack.c.b16 %v502, %v502
  %v535 = vpack.c.b16 %v503, %v503
  %v536 = vpack.c.b16 %v504, %v504
  %v537 = vpack.c.b16 %v505, %v505
  %v538 = vpack.c.b16 %v506, %v506
  %v539 = vpack.c.b16 %v507, %v507
  %v540 = vpack.c.b16 %v508, %v508
  %v541 = vpack.c.b16 %v509, %v509
  %v542 = vpack.c.b16 %v510, %v510
  %v543 = vpack.c.b16 %v511, %v511
  %v544 = vpack.c.b16 %v512, %v512
  %577 = vst [vmem:[#allocation3] sm:$0xf] %v513
  %578 = vst [vmem:[#allocation3 + $0x4] sm:$0xf] %v514
  %579 = vst [vmem:[#allocation3 + $0x8] sm:$0xf] %v515
  %580 = vst [vmem:[#allocation3 + $0xc] sm:$0xf] %v516
  %581 = vst [vmem:[#allocation3 + $0x10] sm:$0xf] %v517
  %582 = vst [vmem:[#allocation3 + $0x14] sm:$0xf] %v518
  %583 = vst [vmem:[#allocation3 + $0x18] sm:$0xf] %v519
  %584 = vst [vmem:[#allocation3 + $0x1c] sm:$0xf] %v520
  %585 = vst [vmem:[#allocation3 + $0x20] sm:$0xf] %v521
  %586 = vst [vmem:[#allocation3 + $0x24] sm:$0xf] %v522
  %587 = vst [vmem:[#allocation3 + $0x28] sm:$0xf] %v523
  %588 = vst [vmem:[#allocation3 + $0x2c] sm:$0xf] %v524
  %589 = vst [vmem:[#allocation3 + $0x30] sm:$0xf] %v525
  %590 = vst [vmem:[#allocation3 + $0x34] sm:$0xf] %v526
  %591 = vst [vmem:[#allocation3 + $0x38] sm:$0xf] %v527
  %592 = vst [vmem:[#allocation3 + $0x3c] sm:$0xf] %v528
  %593 = vst [vmem:[#allocation3 + $0x40] sm:$0xf] %v529
  %594 = vst [vmem:[#allocation3 + $0x44] sm:$0xf] %v530
  %595 = vst [vmem:[#allocation3 + $0x48] sm:$0xf] %v531
  %596 = vst [vmem:[#allocation3 + $0x4c] sm:$0xf] %v532
  %597 = vst [vmem:[#allocation3 + $0x50] sm:$0xf] %v533
  %598 = vst [vmem:[#allocation3 + $0x54] sm:$0xf] %v534
  %599 = vst [vmem:[#allocation3 + $0x58] sm:$0xf] %v535
  %600 = vst [vmem:[#allocation3 + $0x5c] sm:$0xf] %v536
  %601 = vst [vmem:[#allocation3 + $0x60] sm:$0xf] %v537
  %602 = vst [vmem:[#allocation3 + $0x64] sm:$0xf] %v538
  %603 = vst [vmem:[#allocation3 + $0x68] sm:$0xf] %v539
  %604 = vst [vmem:[#allocation3 + $0x6c] sm:$0xf] %v540
  %605 = vst [vmem:[#allocation3 + $0x70] sm:$0xf] %v541
  %606 = vst [vmem:[#allocation3 + $0x74] sm:$0xf] %v542
  %607 = vst [vmem:[#allocation3 + $0x78] sm:$0xf] %v543
  %608 = vst [vmem:[#allocation3 + $0x7c] sm:$0xf] %v544
  %v609 = vld [vmem:[#allocation2] sm:$0xff]
  %v610 = vld [vmem:[#allocation2 + $0x8] sm:$0xff]
  %v611 = vld [vmem:[#allocation2 + $0x10] sm:$0xff]
  %v612 = vld [vmem:[#allocation2 + $0x18] sm:$0xff]
  %v613 = vld [vmem:[#allocation2 + $0x20] sm:$0xff]
  %v614 = vld [vmem:[#allocation2 + $0x28] sm:$0xff]
  %v615 = vld [vmem:[#allocation2 + $0x30] sm:$0xff]
  %v616 = vld [vmem:[#allocation2 + $0x38] sm:$0xff]
  %v617 = vld [vmem:[#allocation2 + $0x40] sm:$0xff]
  %v618 = vld [vmem:[#allocation2 + $0x48] sm:$0xff]
  %v619 = vld [vmem:[#allocation2 + $0x50] sm:$0xff]
  %v620 = vld [vmem:[#allocation2 + $0x58] sm:$0xff]
  %v621 = vld [vmem:[#allocation2 + $0x60] sm:$0xff]
  %v622 = vld [vmem:[#allocation2 + $0x68] sm:$0xff]
  %v623 = vld [vmem:[#allocation2 + $0x70] sm:$0xff]
  %v624 = vld [vmem:[#allocation2 + $0x78] sm:$0xff]
  %v625 = vld [vmem:[#allocation2 + $0x80] sm:$0xff]
  %v626 = vld [vmem:[#allocation2 + $0x88] sm:$0xff]
  %v627 = vld [vmem:[#allocation2 + $0x90] sm:$0xff]
  %v628 = vld [vmem:[#allocation2 + $0x98] sm:$0xff]
  %v629 = vld [vmem:[#allocation2 + $0xa0] sm:$0xff]
  %v630 = vld [vmem:[#allocation2 + $0xa8] sm:$0xff]
  %v631 = vld [vmem:[#allocation2 + $0xb0] sm:$0xff]
  %v632 = vld [vmem:[#allocation2 + $0xb8] sm:$0xff]
  %v633 = vld [vmem:[#allocation2 + $0xc0] sm:$0xff]
  %v634 = vld [vmem:[#allocation2 + $0xc8] sm:$0xff]
  %v635 = vld [vmem:[#allocation2 + $0xd0] sm:$0xff]
  %v636 = vld [vmem:[#allocation2 + $0xd8] sm:$0xff]
  %v637 = vld [vmem:[#allocation2 + $0xe0] sm:$0xff]
  %v638 = vld [vmem:[#allocation2 + $0xe8] sm:$0xff]
  %v639 = vld [vmem:[#allocation2 + $0xf0] sm:$0xff]
  %v640 = vld [vmem:[#allocation2 + $0xf8] sm:$0xff]
  %v641 = vld [vmem:[#allocation3] sm:$0xf]
  %v642 = vld [vmem:[#allocation3 + $0x4] sm:$0xf]
  %v643 = vld [vmem:[#allocation3 + $0x8] sm:$0xf]
  %v644 = vld [vmem:[#allocation3 + $0xc] sm:$0xf]
  %v645 = vld [vmem:[#allocation3 + $0x10] sm:$0xf]
  %v646 = vld [vmem:[#allocation3 + $0x14] sm:$0xf]
  %v647 = vld [vmem:[#allocation3 + $0x18] sm:$0xf]
  %v648 = vld [vmem:[#allocation3 + $0x1c] sm:$0xf]
  %v649 = vld [vmem:[#allocation3 + $0x20] sm:$0xf]
  %v650 = vld [vmem:[#allocation3 + $0x24] sm:$0xf]
  %v651 = vld [vmem:[#allocation3 + $0x28] sm:$0xf]
  %v652 = vld [vmem:[#allocation3 + $0x2c] sm:$0xf]
  %v653 = vld [vmem:[#allocation3 + $0x30] sm:$0xf]
  %v654 = vld [vmem:[#allocation3 + $0x34] sm:$0xf]
  %v655 = vld [vmem:[#allocation3 + $0x38] sm:$0xf]
  %v656 = vld [vmem:[#allocation3 + $0x3c] sm:$0xf]
  %v657 = vld [vmem:[#allocation3 + $0x40] sm:$0xf]
  %v658 = vld [vmem:[#allocation3 + $0x44] sm:$0xf]
  %v659 = vld [vmem:[#allocation3 + $0x48] sm:$0xf]
  %v660 = vld [vmem:[#allocation3 + $0x4c] sm:$0xf]
  %v661 = vld [vmem:[#allocation3 + $0x50] sm:$0xf]
  %v662 = vld [vmem:[#allocation3 + $0x54] sm:$0xf]
  %v663 = vld [vmem:[#allocation3 + $0x58] sm:$0xf]
  %v664 = vld [vmem:[#allocation3 + $0x5c] sm:$0xf]
  %v665 = vld [vmem:[#allocation3 + $0x60] sm:$0xf]
  %v666 = vld [vmem:[#allocation3 + $0x64] sm:$0xf]
  %v667 = vld [vmem:[#allocation3 + $0x68] sm:$0xf]
  %v668 = vld [vmem:[#allocation3 + $0x6c] sm:$0xf]
  %v669 = vld [vmem:[#allocation3 + $0x70] sm:$0xf]
  %v670 = vld [vmem:[#allocation3 + $0x74] sm:$0xf]
  %v671 = vld [vmem:[#allocation3 + $0x78] sm:$0xf]
  %v672 = vld [vmem:[#allocation3 + $0x7c] sm:$0xf]
  %v673 = vld [vmem:[%s3] sm:$0xf]
  %v674 = vld [vmem:[%s3 + $0x4] sm:$0xf]
  %v675 = vld [vmem:[%s3 + $0x8] sm:$0xf]
  %v676 = vld [vmem:[%s3 + $0xc] sm:$0xf]
  %v677 = vld [vmem:[%s3 + $0x10] sm:$0xf]
  %v678 = vld [vmem:[%s3 + $0x14] sm:$0xf]
  %v679 = vld [vmem:[%s3 + $0x18] sm:$0xf]
  %v680 = vld [vmem:[%s3 + $0x1c] sm:$0xf]
  %v681 = vld [vmem:[%s3 + $0x20] sm:$0xf]
  %v682 = vld [vmem:[%s3 + $0x24] sm:$0xf]
  %v683 = vld [vmem:[%s3 + $0x28] sm:$0xf]
  %v684 = vld [vmem:[%s3 + $0x2c] sm:$0xf]
  %v685 = vld [vmem:[%s3 + $0x30] sm:$0xf]
  %v686 = vld [vmem:[%s3 + $0x34] sm:$0xf]
  %v687 = vld [vmem:[%s3 + $0x38] sm:$0xf]
  %v688 = vld [vmem:[%s3 + $0x3c] sm:$0xf]
  %v721 = vunpack.c.l.b16 %v641
  %v722 = vunpack.c.l.b16 %v642
  %v723 = vunpack.c.l.b16 %v643
  %v724 = vunpack.c.l.b16 %v644
  %v725 = vunpack.c.l.b16 %v645
  %v726 = vunpack.c.l.b16 %v646
  %v727 = vunpack.c.l.b16 %v647
  %v728 = vunpack.c.l.b16 %v648
  %v729 = vunpack.c.l.b16 %v649
  %v730 = vunpack.c.l.b16 %v650
  %v731 = vunpack.c.l.b16 %v651
  %v732 = vunpack.c.l.b16 %v652
  %v733 = vunpack.c.l.b16 %v653
  %v734 = vunpack.c.l.b16 %v654
  %v735 = vunpack.c.l.b16 %v655
  %v736 = vunpack.c.l.b16 %v656
  %v737 = vunpack.c.l.b16 %v657
  %v738 = vunpack.c.l.b16 %v658
  %v739 = vunpack.c.l.b16 %v659
  %v740 = vunpack.c.l.b16 %v660
  %v741 = vunpack.c.l.b16 %v661
  %v742 = vunpack.c.l.b16 %v662
  %v743 = vunpack.c.l.b16 %v663
  %v744 = vunpack.c.l.b16 %v664
  %v745 = vunpack.c.l.b16 %v665
  %v746 = vunpack.c.l.b16 %v666
  %v747 = vunpack.c.l.b16 %v667
  %v748 = vunpack.c.l.b16 %v668
  %v749 = vunpack.c.l.b16 %v669
  %v750 = vunpack.c.l.b16 %v670
  %v751 = vunpack.c.l.b16 %v671
  %v752 = vunpack.c.l.b16 %v672
  %v753 = vpack.c.b16 %v722, %v721
  %v754 = vpack.c.b16 %v724, %v723
  %v755 = vpack.c.b16 %v726, %v725
  %v756 = vpack.c.b16 %v728, %v727
  %v757 = vpack.c.b16 %v730, %v729
  %v758 = vpack.c.b16 %v732, %v731
  %v759 = vpack.c.b16 %v734, %v733
  %v760 = vpack.c.b16 %v736, %v735
  %v761 = vpack.c.b16 %v738, %v737
  %v762 = vpack.c.b16 %v740, %v739
  %v763 = vpack.c.b16 %v742, %v741
  %v764 = vpack.c.b16 %v744, %v743
  %v765 = vpack.c.b16 %v746, %v745
  %v766 = vpack.c.b16 %v748, %v747
  %v767 = vpack.c.b16 %v750, %v749
  %v768 = vpack.c.b16 %v752, %v751
  %v801 = vunpack.c.l.b16 %v673
  %v802 = vunpack.c.l.b16 %v674
  %v803 = vunpack.c.l.b16 %v675
  %v804 = vunpack.c.l.b16 %v676
  %v805 = vunpack.c.l.b16 %v677
  %v806 = vunpack.c.l.b16 %v678
  %v807 = vunpack.c.l.b16 %v679
  %v808 = vunpack.c.l.b16 %v680
  %v809 = vunpack.c.l.b16 %v681
  %v810 = vunpack.c.l.b16 %v682
  %v811 = vunpack.c.l.b16 %v683
  %v812 = vunpack.c.l.b16 %v684
  %v813 = vunpack.c.l.b16 %v685
  %v814 = vunpack.c.l.b16 %v686
  %v815 = vunpack.c.l.b16 %v687
  %v816 = vunpack.c.l.b16 %v688
  %v817 = vpack.c.b16 %v802, %v801
  %v818 = vpack.c.b16 %v804, %v803
  %v819 = vpack.c.b16 %v806, %v805
  %v820 = vpack.c.b16 %v808, %v807
  %v821 = vpack.c.b16 %v810, %v809
  %v822 = vpack.c.b16 %v812, %v811
  %v823 = vpack.c.b16 %v814, %v813
  %v824 = vpack.c.b16 %v816, %v815
  %833 = vmatprep.subr.bf16.mxu0 0
  %834 = vmatpush1.bf16.msra.mxu0 %v824
  %835 = vmatprep.subr.bf16.mxu0 0
  %836 = vmatpush1.bf16.msra.mxu0 %v823
  %837 = vmatprep.subr.bf16.mxu0 0
  %838 = vmatpush1.bf16.msra.mxu0 %v822
  %839 = vmatprep.subr.bf16.mxu0 0
  %840 = vmatpush1.bf16.msra.mxu0 %v821
  %841 = vmatprep.subr.bf16.mxu0 0
  %842 = vmatpush1.bf16.msra.mxu0 %v820
  %843 = vmatprep.subr.bf16.mxu0 0
  %844 = vmatpush1.bf16.msra.mxu0 %v819
  %845 = vmatprep.subr.bf16.mxu0 0
  %846 = vmatpush1.bf16.msra.mxu0 %v818
  %847 = vmatprep.subr.bf16.mxu0 0
  %848 = vmatpush1.bf16.msra.mxu0 %v817
  %849 = vmatprep.subr.bf16.mxu0 0
  %850 = vmatpush2.bf16.msra.mxu0 0
  %851 = vmatprep.subr.bf16.mxu0 0
  %852 = vmatpush2.bf16.msra.mxu0 0
  %853 = vmatprep.subr.bf16.mxu0 0
  %854 = vmatpush2.bf16.msra.mxu0 0
  %855 = vmatprep.subr.bf16.mxu0 0
  %856 = vmatpush2.bf16.msra.mxu0 0
  %857 = vmatprep.subr.bf16.mxu0 0
  %858 = vmatpush2.bf16.msra.mxu0 0
  %859 = vmatprep.subr.bf16.mxu0 0
  %860 = vmatpush2.bf16.msra.mxu0 0
  %861 = vmatprep.subr.bf16.mxu0 0
  %862 = vmatpush2.bf16.msra.mxu0 0
  %863 = vmatprep.subr.bf16.mxu0 0
  %864 = vmatpush2.bf16.msra.mxu0 0
  %865 = vmatprep.mubr.bf16.mxu0 0
  %866 = vmatmul.mubr.bf16.gmra.mxu0 %v753
  %v867 = vpop.f32.mrf.mxu0
  %v868 = vadd.f32 0.0, %v867
  %v869 = vpop.f32.mrf.mxu0
  %v870 = vpop.f32.mrf.mxu0
  %v871 = vadd.f32 0.0, %v870
  %v872 = vpop.f32.mrf.mxu0
  %873 = vmatprep.mubr.bf16.mxu0 0
  %874 = vmatmul.mubr.bf16.gmra.mxu0 %v754
  %v875 = vpop.f32.mrf.mxu0
  %v876 = vadd.f32 0.0, %v875
  %v877 = vpop.f32.mrf.mxu0
  %v878 = vpop.f32.mrf.mxu0
  %v879 = vadd.f32 0.0, %v878
  %v880 = vpop.f32.mrf.mxu0
  %881 = vmatprep.mubr.bf16.mxu0 0
  %882 = vmatmul.mubr.bf16.gmra.mxu0 %v755
  %v883 = vpop.f32.mrf.mxu0
  %v884 = vadd.f32 0.0, %v883
  %v885 = vpop.f32.mrf.mxu0
  %v886 = vpop.f32.mrf.mxu0
  %v887 = vadd.f32 0.0, %v886
  %v888 = vpop.f32.mrf.mxu0
  %889 = vmatprep.mubr.bf16.mxu0 0
  %890 = vmatmul.mubr.bf16.gmra.mxu0 %v756
  %v891 = vpop.f32.mrf.mxu0
  %v892 = vadd.f32 0.0, %v891
  %v893 = vpop.f32.mrf.mxu0
  %v894 = vpop.f32.mrf.mxu0
  %v895 = vadd.f32 0.0, %v894
  %v896 = vpop.f32.mrf.mxu0
  %897 = vmatprep.mubr.bf16.mxu0 0
  %898 = vmatmul.mubr.bf16.gmra.mxu0 %v757
  %v899 = vpop.f32.mrf.mxu0
  %v900 = vadd.f32 0.0, %v899
  %v901 = vpop.f32.mrf.mxu0
  %v902 = vpop.f32.mrf.mxu0
  %v903 = vadd.f32 0.0, %v902
  %v904 = vpop.f32.mrf.mxu0
  %905 = vmatprep.mubr.bf16.mxu0 0
  %906 = vmatmul.mubr.bf16.gmra.mxu0 %v758
  %v907 = vpop.f32.mrf.mxu0
  %v908 = vadd.f32 0.0, %v907
  %v909 = vpop.f32.mrf.mxu0
  %v910 = vpop.f32.mrf.mxu0
  %v911 = vadd.f32 0.0, %v910
  %v912 = vpop.f32.mrf.mxu0
  %913 = vmatprep.mubr.bf16.mxu0 0
  %914 = vmatmul.mubr.bf16.gmra.mxu0 %v759
  %v915 = vpop.f32.mrf.mxu0
  %v916 = vadd.f32 0.0, %v915
  %v917 = vpop.f32.mrf.mxu0
  %v918 = vpop.f32.mrf.mxu0
  %v919 = vadd.f32 0.0, %v918
  %v920 = vpop.f32.mrf.mxu0
  %921 = vmatprep.mubr.bf16.mxu0 0
  %922 = vmatmul.mubr.bf16.gmra.mxu0 %v760
  %v923 = vpop.f32.mrf.mxu0
  %v924 = vadd.f32 0.0, %v923
  %v925 = vpop.f32.mrf.mxu0
  %v926 = vpop.f32.mrf.mxu0
  %v927 = vadd.f32 0.0, %v926
  %v928 = vpop.f32.mrf.mxu0
  %929 = vmatprep.mubr.bf16.mxu0 0
  %930 = vmatmul.mubr.bf16.gmra.mxu0 %v761
  %v931 = vpop.f32.mrf.mxu0
  %v932 = vadd.f32 0.0, %v931
  %v933 = vpop.f32.mrf.mxu0
  %v934 = vpop.f32.mrf.mxu0
  %v935 = vadd.f32 0.0, %v934
  %v936 = vpop.f32.mrf.mxu0
  %937 = vmatprep.mubr.bf16.mxu0 0
  %938 = vmatmul.mubr.bf16.gmra.mxu0 %v762
  %v939 = vpop.f32.mrf.mxu0
  %v940 = vadd.f32 0.0, %v939
  %v941 = vpop.f32.mrf.mxu0
  %v942 = vpop.f32.mrf.mxu0
  %v943 = vadd.f32 0.0, %v942
  %v944 = vpop.f32.mrf.mxu0
  %945 = vmatprep.mubr.bf16.mxu0 0
  %946 = vmatmul.mubr.bf16.gmra.mxu0 %v763
  %v947 = vpop.f32.mrf.mxu0
  %v948 = vadd.f32 0.0, %v947
  %v949 = vpop.f32.mrf.mxu0
  %v950 = vpop.f32.mrf.mxu0
  %v951 = vadd.f32 0.0, %v950
  %v952 = vpop.f32.mrf.mxu0
  %953 = vmatprep.mubr.bf16.mxu0 0
  %954 = vmatmul.mubr.bf16.gmra.mxu0 %v764
  %v955 = vpop.f32.mrf.mxu0
  %v956 = vadd.f32 0.0, %v955
  %v957 = vpop.f32.mrf.mxu0
  %v958 = vpop.f32.mrf.mxu0
  %v959 = vadd.f32 0.0, %v958
  %v960 = vpop.f32.mrf.mxu0
  %961 = vmatprep.mubr.bf16.mxu0 0
  %962 = vmatmul.mubr.bf16.gmra.mxu0 %v765
  %v963 = vpop.f32.mrf.mxu0
  %v964 = vadd.f32 0.0, %v963
  %v965 = vpop.f32.mrf.mxu0
  %v966 = vpop.f32.mrf.mxu0
  %v967 = vadd.f32 0.0, %v966
  %v968 = vpop.f32.mrf.mxu0
  %969 = vmatprep.mubr.bf16.mxu0 0
  %970 = vmatmul.mubr.bf16.gmra.mxu0 %v766
  %v971 = vpop.f32.mrf.mxu0
  %v972 = vadd.f32 0.0, %v971
  %v973 = vpop.f32.mrf.mxu0
  %v974 = vpop.f32.mrf.mxu0
  %v975 = vadd.f32 0.0, %v974
  %v976 = vpop.f32.mrf.mxu0
  %977 = vmatprep.mubr.bf16.mxu0 0
  %978 = vmatmul.mubr.bf16.gmra.mxu0 %v767
  %v979 = vpop.f32.mrf.mxu0
  %v980 = vadd.f32 0.0, %v979
  %v981 = vpop.f32.mrf.mxu0
  %v982 = vpop.f32.mrf.mxu0
  %v983 = vadd.f32 0.0, %v982
  %v984 = vpop.f32.mrf.mxu0
  %985 = vmatprep.mubr.bf16.mxu0 0
  %986 = vmatmul.mubr.bf16.gmra.mxu0 %v768
  %v987 = vpop.f32.mrf.mxu0
  %v988 = vadd.f32 0.0, %v987
  %v989 = vpop.f32.mrf.mxu0
  %v990 = vpop.f32.mrf.mxu0
  %v991 = vadd.f32 0.0, %v990
  %v992 = vpop.f32.mrf.mxu0
  %993 = vdwg.mxu0
  %v994 = vadd.f32 %v609, %v868
  %v995 = vadd.f32 %v610, %v871
  %v996 = vadd.f32 %v611, %v876
  %v997 = vadd.f32 %v612, %v879
  %v998 = vadd.f32 %v613, %v884
  %v999 = vadd.f32 %v614, %v887
  %v1000 = vadd.f32 %v615, %v892
  %v1001 = vadd.f32 %v616, %v895
  %v1002 = vadd.f32 %v617, %v900
  %v1003 = vadd.f32 %v618, %v903
  %v1004 = vadd.f32 %v619, %v908
  %v1005 = vadd.f32 %v620, %v911
  %v1006 = vadd.f32 %v621, %v916
  %v1007 = vadd.f32 %v622, %v919
  %v1008 = vadd.f32 %v623, %v924
  %v1009 = vadd.f32 %v624, %v927
  %v1010 = vadd.f32 %v625, %v932
  %v1011 = vadd.f32 %v626, %v935
  %v1012 = vadd.f32 %v627, %v940
  %v1013 = vadd.f32 %v628, %v943
  %v1014 = vadd.f32 %v629, %v948
  %v1015 = vadd.f32 %v630, %v951
  %v1016 = vadd.f32 %v631, %v956
  %v1017 = vadd.f32 %v632, %v959
  %v1018 = vadd.f32 %v633, %v964
  %v1019 = vadd.f32 %v634, %v967
  %v1020 = vadd.f32 %v635, %v972
  %v1021 = vadd.f32 %v636, %v975
  %v1022 = vadd.f32 %v637, %v980
  %v1023 = vadd.f32 %v638, %v983
  %v1024 = vadd.f32 %v639, %v988
  %v1025 = vadd.f32 %v640, %v991
  %1026 = vst [vmem:[#allocation2] sm:$0xff] %v994
  %1027 = vst [vmem:[#allocation2 + $0x8] sm:$0xff] %v995
  %1028 = vst [vmem:[#allocation2 + $0x10] sm:$0xff] %v996
  %1029 = vst [vmem:[#allocation2 + $0x18] sm:$0xff] %v997
  %1030 = vst [vmem:[#allocation2 + $0x20] sm:$0xff] %v998
  %1031 = vst [vmem:[#allocation2 + $0x28] sm:$0xff] %v999
  %1032 = vst [vmem:[#allocation2 + $0x30] sm:$0xff] %v1000
  %1033 = vst [vmem:[#allocation2 + $0x38] sm:$0xff] %v1001
  %1034 = vst [vmem:[#allocation2 + $0x40] sm:$0xff] %v1002
  %1035 = vst [vmem:[#allocation2 + $0x48] sm:$0xff] %v1003
  %1036 = vst [vmem:[#allocation2 + $0x50] sm:$0xff] %v1004
  %1037 = vst [vmem:[#allocation2 + $0x58] sm:$0xff] %v1005
  %1038 = vst [vmem:[#allocation2 + $0x60] sm:$0xff] %v1006
  %1039 = vst [vmem:[#allocation2 + $0x68] sm:$0xff] %v1007
  %1040 = vst [vmem:[#allocation2 + $0x70] sm:$0xff] %v1008
  %1041 = vst [vmem:[#allocation2 + $0x78] sm:$0xff] %v1009
  %1042 = vst [vmem:[#allocation2 + $0x80] sm:$0xff] %v1010
  %1043 = vst [vmem:[#allocation2 + $0x88] sm:$0xff] %v1011
  %1044 = vst [vmem:[#allocation2 + $0x90] sm:$0xff] %v1012
  %1045 = vst [vmem:[#allocation2 + $0x98] sm:$0xff] %v1013
  %1046 = vst [vmem:[#allocation2 + $0xa0] sm:$0xff] %v1014
  %1047 = vst [vmem:[#allocation2 + $0xa8] sm:$0xff] %v1015
  %1048 = vst [vmem:[#allocation2 + $0xb0] sm:$0xff] %v1016
  %1049 = vst [vmem:[#allocation2 + $0xb8] sm:$0xff] %v1017
  %1050 = vst [vmem:[#allocation2 + $0xc0] sm:$0xff] %v1018
  %1051 = vst [vmem:[#allocation2 + $0xc8] sm:$0xff] %v1019
  %1052 = vst [vmem:[#allocation2 + $0xd0] sm:$0xff] %v1020
  %1053 = vst [vmem:[#allocation2 + $0xd8] sm:$0xff] %v1021
  %1054 = vst [vmem:[#allocation2 + $0xe0] sm:$0xff] %v1022
  %1055 = vst [vmem:[#allocation2 + $0xe8] sm:$0xff] %v1023
  %1056 = vst [vmem:[#allocation2 + $0xf0] sm:$0xff] %v1024
  %1057 = vst [vmem:[#allocation2 + $0xf8] sm:$0xff] %v1025
  // Predicated region
  $region26: #{expert_forward.1} parent=0 // pred_check
    %p1058 = pneg %p21
  $region27: #{expert_forward.1} parent=0 // pred_check_branch
    %1060 = sbr.rel (%p1058) target = $region29
  $region28: #{expert_forward.1} parent=0 // pred_region
    %v1061 = vld [vmem:[#allocation2] sm:$0xff]
    %v1062 = vld [vmem:[#allocation2 + $0x8] sm:$0xff]
    %v1063 = vld [vmem:[#allocation2 + $0x10] sm:$0xff]
    %v1064 = vld [vmem:[#allocation2 + $0x18] sm:$0xff]
    %v1065 = vld [vmem:[#allocation2 + $0x20] sm:$0xff]
    %v1066 = vld [vmem:[#allocation2 + $0x28] sm:$0xff]
    %v1067 = vld [vmem:[#allocation2 + $0x30] sm:$0xff]
    %v1068 = vld [vmem:[#allocation2 + $0x38] sm:$0xff]
    %v1069 = vld [vmem:[#allocation2 + $0x40] sm:$0xff]
    %v1070 = vld [vmem:[#allocation2 + $0x48] sm:$0xff]
    %v1071 = vld [vmem:[#allocation2 + $0x50] sm:$0xff]
    %v1072 = vld [vmem:[#allocation2 + $0x58] sm:$0xff]
    %v1073 = vld [vmem:[#allocation2 + $0x60] sm:$0xff]
    %v1074 = vld [vmem:[#allocation2 + $0x68] sm:$0xff]
    %v1075 = vld [vmem:[#allocation2 + $0x70] sm:$0xff]
    %v1076 = vld [vmem:[#allocation2 + $0x78] sm:$0xff]
    %v1077 = vld [vmem:[#allocation2 + $0x80] sm:$0xff]
    %v1078 = vld [vmem:[#allocation2 + $0x88] sm:$0xff]
    %v1079 = vld [vmem:[#allocation2 + $0x90] sm:$0xff]
    %v1080 = vld [vmem:[#allocation2 + $0x98] sm:$0xff]
    %v1081 = vld [vmem:[#allocation2 + $0xa0] sm:$0xff]
    %v1082 = vld [vmem:[#allocation2 + $0xa8] sm:$0xff]
    %v1083 = vld [vmem:[#allocation2 + $0xb0] sm:$0xff]
    %v1084 = vld [vmem:[#allocation2 + $0xb8] sm:$0xff]
    %v1085 = vld [vmem:[#allocation2 + $0xc0] sm:$0xff]
    %v1086 = vld [vmem:[#allocation2 + $0xc8] sm:$0xff]
    %v1087 = vld [vmem:[#allocation2 + $0xd0] sm:$0xff]
    %v1088 = vld [vmem:[#allocation2 + $0xd8] sm:$0xff]
    %v1089 = vld [vmem:[#allocation2 + $0xe0] sm:$0xff]
    %v1090 = vld [vmem:[#allocation2 + $0xe8] sm:$0xff]
    %v1091 = vld [vmem:[#allocation2 + $0xf0] sm:$0xff]
    %v1092 = vld [vmem:[#allocation2 + $0xf8] sm:$0xff]
    %v1093 = vld [vmem:[%s4] sm:$0x1]
    %v1095 = vlaneseq
    %v1096 = vshrl.u32 %v1095, 7
    %v1097 = vsub.s32 0, %v1096
    %v1098 = vrot.slane %v1093, %v1097
    %v1100 = vadd.f32 %v1061, %v1098
    %v1101 = vadd.f32 %v1062, %v1098
    %v1102 = vadd.f32 %v1063, %v1098
    %v1103 = vadd.f32 %v1064, %v1098
    %v1104 = vadd.f32 %v1065, %v1098
    %v1105 = vadd.f32 %v1066, %v1098
    %v1106 = vadd.f32 %v1067, %v1098
    %v1107 = vadd.f32 %v1068, %v1098
    %v1108 = vadd.f32 %v1069, %v1098
    %v1109 = vadd.f32 %v1070, %v1098
    %v1110 = vadd.f32 %v1071, %v1098
    %v1111 = vadd.f32 %v1072, %v1098
    %v1112 = vadd.f32 %v1073, %v1098
    %v1113 = vadd.f32 %v1074, %v1098
    %v1114 = vadd.f32 %v1075, %v1098
    %v1115 = vadd.f32 %v1076, %v1098
    %v1116 = vadd.f32 %v1077, %v1098
    %v1117 = vadd.f32 %v1078, %v1098
    %v1118 = vadd.f32 %v1079, %v1098
    %v1119 = vadd.f32 %v1080, %v1098
    %v1120 = vadd.f32 %v1081, %v1098
    %v1121 = vadd.f32 %v1082, %v1098
    %v1122 = vadd.f32 %v1083, %v1098
    %v1123 = vadd.f32 %v1084, %v1098
    %v1124 = vadd.f32 %v1085, %v1098
    %v1125 = vadd.f32 %v1086, %v1098
    %v1126 = vadd.f32 %v1087, %v1098
    %v1127 = vadd.f32 %v1088, %v1098
    %v1128 = vadd.f32 %v1089, %v1098
    %v1129 = vadd.f32 %v1090, %v1098
    %v1130 = vadd.f32 %v1091, %v1098
    %v1131 = vadd.f32 %v1092, %v1098
    %1132 = vst [vmem:[%s5] sm:$0xff] %v1100
    %1133 = vst [vmem:[%s5 + $0x8] sm:$0xff] %v1101
    %1134 = vst [vmem:[%s5 + $0x10] sm:$0xff] %v1102
    %1135 = vst [vmem:[%s5 + $0x18] sm:$0xff] %v1103
    %1136 = vst [vmem:[%s5 + $0x20] sm:$0xff] %v1104
    %1137 = vst [vmem:[%s5 + $0x28] sm:$0xff] %v1105
    %1138 = vst [vmem:[%s5 + $0x30] sm:$0xff] %v1106
    %1139 = vst [vmem:[%s5 + $0x38] sm:$0xff] %v1107
    %1140 = vst [vmem:[%s5 + $0x40] sm:$0xff] %v1108
    %1141 = vst [vmem:[%s5 + $0x48] sm:$0xff] %v1109
    %1142 = vst [vmem:[%s5 + $0x50] sm:$0xff] %v1110
    %1143 = vst [vmem:[%s5 + $0x58] sm:$0xff] %v1111
    %1144 = vst [vmem:[%s5 + $0x60] sm:$0xff] %v1112
    %1145 = vst [vmem:[%s5 + $0x68] sm:$0xff] %v1113
    %1146 = vst [vmem:[%s5 + $0x70] sm:$0xff] %v1114
    %1147 = vst [vmem:[%s5 + $0x78] sm:$0xff] %v1115
    %1148 = vst [vmem:[%s5 + $0x80] sm:$0xff] %v1116
    %1149 = vst [vmem:[%s5 + $0x88] sm:$0xff] %v1117
    %1150 = vst [vmem:[%s5 + $0x90] sm:$0xff] %v1118
    %1151 = vst [vmem:[%s5 + $0x98] sm:$0xff] %v1119
    %1152 = vst [vmem:[%s5 + $0xa0] sm:$0xff] %v1120
    %1153 = vst [vmem:[%s5 + $0xa8] sm:$0xff] %v1121
    %1154 = vst [vmem:[%s5 + $0xb0] sm:$0xff] %v1122
    %1155 = vst [vmem:[%s5 + $0xb8] sm:$0xff] %v1123
    %1156 = vst [vmem:[%s5 + $0xc0] sm:$0xff] %v1124
    %1157 = vst [vmem:[%s5 + $0xc8] sm:$0xff] %v1125
    %1158 = vst [vmem:[%s5 + $0xd0] sm:$0xff] %v1126
    %1159 = vst [vmem:[%s5 + $0xd8] sm:$0xff] %v1127
    %1160 = vst [vmem:[%s5 + $0xe0] sm:$0xff] %v1128
    %1161 = vst [vmem:[%s5 + $0xe8] sm:$0xff] %v1129
    %1162 = vst [vmem:[%s5 + $0xf0] sm:$0xff] %v1130
    %1163 = vst [vmem:[%s5 + $0xf8] sm:$0xff] %v1131
  $region29: #{expert_forward.1} parent=0 // pred_fallthru
    _
  // Predicated region
  $region30: #{expert_forward.1} parent=0 // pred_check
    _
  $region31: #{expert_forward.1} parent=0 // pred_check_branch
    %1165 = sbr.rel (0) target = $region33
  $region32: #{expert_forward.1} parent=0 // pred_region
    _
  $region33: #{expert_forward.1} parent=0 // pred_fallthru
    _
  // Predicated region
  $region34: #{expert_forward.1} parent=0 // pred_check
    _
  $region35: #{expert_forward.1} parent=0 // pred_check_branch
    %1167 = sbr.rel (0) target = $region37
  $region36: #{expert_forward.1} parent=0 // pred_region
    _
  $region37: #{expert_forward.1} parent=0 // pred_fallthru
    _

</llo_original>
